<compile_context>
chip_gen: v7x
topology: tpu7x:2x2x1
jax: 0.10.0
libtpu: 0.0.40
codegen_flags: <defaults>
</compile_context>

<pallas_src>
import jax
import jax.numpy as jnp
from jax.experimental import pallas as pl
from jax.experimental.pallas import tpu as pltpu

INPUT_SIZE = 2
OUTPUT_SIZE = 11
MAX_BATCH_TILE = 4096   # big tile amortizes ~0.35us/step grid overhead


def _round_up(n, m):
    return ((n + m - 1) // m) * m


def linear_kernel(x_ref, w_ref, b_ref, o_ref):
    # x_ref: (TB, IN)       input tile (last block may be ragged; rows independent)
    # w_ref: (IN, OUT)      pre-transposed weight, resident across all grid steps
    # b_ref: (1,  OUT)      bias, resident
    # o_ref: (TB, OUT)      unpadded output tile (masked vst is free here)
    x = x_ref[...]
    w = w_ref[...]
    # Two VPU FMAs instead of an MXU dot: y = sum_k x[:, k] * w[k, :] + b.
    y = b_ref[...]                      # (1, OUT) broadcasts over the batch tile
    for k in range(x_ref.shape[1]):     # static, unrolled at trace time (IN=2)
        y = y + x[:, k:k + 1] * w[k:k + 1, :]
    o_ref[...] = y.astype(o_ref.dtype)


def linear_forward(x, w, b):
    """x: (B, IN), w: (OUT, IN) [PyTorch layout], b: (OUT,) or (1, OUT)."""
    B, in_dim = x.shape
    out_dim = w.shape[0]

    # Batch tile: multiple of 8 (sublane alignment), capped by MAX_BATCH_TILE.
    tb = min(MAX_BATCH_TILE, _round_up(B, 8))
    # v7x: keep >=2 grid steps for moderate B so both TensorCores get work
    # (no-op on single-TC v5e/v6e; irrelevant for tiny B).
    if B >= 16:
        tb = min(tb, _round_up(pl.cdiv(B, 2), 8))

    grid = (pl.cdiv(B, tb),)

    # Layout plumbing in the wrapper only: transpose W to (IN, OUT), bias -> (1, OUT).
    w_t = jnp.transpose(w)
    b_p = jnp.reshape(b, (1, -1))

    return pl.pallas_call(
        linear_kernel,
        out_shape=jax.ShapeDtypeStruct((B, out_dim), x.dtype),
        grid_spec=pl.GridSpec(
            grid=grid,
            in_specs=[
                pl.BlockSpec((tb, in_dim), lambda i: (i, 0)),
                pl.BlockSpec((in_dim, out_dim), lambda i: (0, 0)),
                pl.BlockSpec((1, out_dim), lambda i: (0, 0)),
            ],
            out_specs=pl.BlockSpec((tb, out_dim), lambda i: (i, 0)),
        ),
        compiler_params=pltpu.CompilerParams(
            dimension_semantics=("parallel",),
            vmem_limit_bytes=32 * 1024 * 1024,  # keep full double-buffering at tb=4096 on v5e
        ),
    )(x, w_t, b_p)


if __name__ == "__main__":
    key = jax.random.PRNGKey(0)
    kx, kw, kb = jax.random.split(key, 3)

    batch = 8
    x = jax.random.normal(kx, (batch, INPUT_SIZE), dtype=jnp.float32)

    # Deterministic params mimicking nn.Linear uniform(-1/sqrt(in), 1/sqrt(in))
    bound = 1.0 / (INPUT_SIZE ** 0.5)
    w = jax.random.uniform(
        kw, (OUTPUT_SIZE, INPUT_SIZE), dtype=jnp.float32, minval=-bound, maxval=bound
    )
    b = jax.random.uniform(
        kb, (1, OUTPUT_SIZE), dtype=jnp.float32, minval=-bound, maxval=bound
    )

    out = linear_forward(x, w, b)
    out = jax.block_until_ready(out)

    # Reference check against plain JAX
    ref = x @ w.T + b
    assert out.shape == (batch, OUTPUT_SIZE)
    assert jnp.allclose(out, ref, atol=1e-5, rtol=1e-5)

    print("KERNEL_OK")
</pallas_src>

<mosaic_0001>
module attributes {stable_mosaic.version = 11 : i64} {
  func.func @linear_kernel(%arg0: i32, %arg1: memref<8x2xf32, #tpu.memory_space<vmem>>, %arg2: memref<2x11xf32, #tpu.memory_space<vmem>>, %arg3: memref<1x11xf32, #tpu.memory_space<vmem>>, %arg4: memref<8x11xf32, #tpu.memory_space<vmem>>) attributes {dimension_semantics = [#tpu.dimension_semantics<parallel>], iteration_bounds = array<i64: 1>, scalar_prefetch = 0 : i64, scratch_operands = 0 : i64, tpu.core_type = #tpu.core_type<tc>, window_params = [{transform_indices = @transform_0, window_bounds = array<i64: 8, 2>}, {pipeline_mode = #tpu.pipeline_mode<synchronous>, transform_indices = @transform_1, window_bounds = array<i64: 2, 11>}, {pipeline_mode = #tpu.pipeline_mode<synchronous>, transform_indices = @transform_2, window_bounds = array<i64: 1, 11>}, {transform_indices = @transform_3, window_bounds = array<i64: 8, 11>}]} {
    %c0 = arith.constant 0 : index
    %c0_0 = arith.constant 0 : index
    %0 = vector.load %arg1[%c0, %c0_0] : memref<8x2xf32, #tpu.memory_space<vmem>>, vector<8x2xf32>
    %c0_1 = arith.constant 0 : index
    %c0_2 = arith.constant 0 : index
    %1 = vector.load %arg2[%c0_1, %c0_2] : memref<2x11xf32, #tpu.memory_space<vmem>>, vector<2x11xf32>
    %c0_3 = arith.constant 0 : index
    %c0_4 = arith.constant 0 : index
    %2 = vector.load %arg3[%c0_3, %c0_4] : memref<1x11xf32, #tpu.memory_space<vmem>>, vector<1x11xf32>
    %3 = vector.extract_strided_slice %0 {offsets = [0, 0], sizes = [8, 1], strides = [1, 1]} : vector<8x2xf32> to vector<8x1xf32>
    %4 = vector.extract_strided_slice %1 {offsets = [0, 0], sizes = [1, 11], strides = [1, 1]} : vector<2x11xf32> to vector<1x11xf32>
    %5 = vector.broadcast %3 : vector<8x1xf32> to vector<8x11xf32>
    %6 = vector.broadcast %4 : vector<1x11xf32> to vector<8x11xf32>
    %7 = arith.mulf %5, %6 : vector<8x11xf32>
    %8 = vector.broadcast %2 : vector<1x11xf32> to vector<8x11xf32>
    %9 = arith.addf %8, %7 : vector<8x11xf32>
    %10 = vector.extract_strided_slice %0 {offsets = [0, 1], sizes = [8, 1], strides = [1, 1]} : vector<8x2xf32> to vector<8x1xf32>
    %11 = vector.extract_strided_slice %1 {offsets = [1, 0], sizes = [1, 11], strides = [1, 1]} : vector<2x11xf32> to vector<1x11xf32>
    %12 = vector.broadcast %10 : vector<8x1xf32> to vector<8x11xf32>
    %13 = vector.broadcast %11 : vector<1x11xf32> to vector<8x11xf32>
    %14 = arith.mulf %12, %13 : vector<8x11xf32>
    %15 = arith.addf %9, %14 : vector<8x11xf32>
    %c0_5 = arith.constant 0 : index
    %c0_6 = arith.constant 0 : index
    %16 = vector.load %arg4[%c0_5, %c0_6] : memref<8x11xf32, #tpu.memory_space<vmem>>, vector<8x11xf32>
    tpu.vector_store %arg4[%c0_5, %c0_6], %15 {strides = array<i32>} : memref<8x11xf32, #tpu.memory_space<vmem>>, vector<8x11xf32>,
    return
  }
  func.func @transform_0(%arg0: i32) -> (i32, i32) {
    %c0_i32 = arith.constant 0 : i32
    %c0_i32_0 = arith.constant 0 : i32
    return %arg0, %c0_i32 : i32, i32
  }
  func.func @transform_1(%arg0: i32) -> (i32, i32) {
    %c0_i32 = arith.constant 0 : i32
    %c0_i32_0 = arith.constant 0 : i32
    %c0_i32_1 = arith.constant 0 : i32
    return %c0_i32, %c0_i32_0 : i32, i32
  }
  func.func @transform_2(%arg0: i32) -> (i32, i32) {
    %c0_i32 = arith.constant 0 : i32
    %c0_i32_0 = arith.constant 0 : i32
    %c0_i32_1 = arith.constant 0 : i32
    return %c0_i32, %c0_i32_0 : i32, i32
  }
  func.func @transform_3(%arg0: i32) -> (i32, i32) {
    %c0_i32 = arith.constant 0 : i32
    %c0_i32_0 = arith.constant 0 : i32
    return %arg0, %c0_i32 : i32, i32
  }
}

</mosaic_0001>

<llo_original>
// kernel: tpu_custom_call.1
$region0: #{tpu_custom_call.1}
  #allocation0 [shape = 'u32[]', space=smem, size = 0x4, offset = 0x4, fixed_abs, tag = 'smem constant byte address 0x4 - core index']
  #allocation1 [shape = 'u32[144,128]{1,0:T(1,128)}', space=vmem, size = 0x12000, scoped, tag = 'internal scratch']
  %s0 = inlined_call_operand.vmem [shape: f32[8,2], index: 0, kind: input, shape index: {}]
  %s1 = inlined_call_operand.vmem [shape: f32[2,11], index: 1, kind: input, shape index: {}]
  %s2 = inlined_call_operand.vmem [shape: f32[1,11], index: 2, kind: input, shape index: {}]
  %s3 = inlined_call_operand.hbm [shape: f32[8,11], index: 3, kind: output, shape index: {}]
  %s4 = sld [smem:[#allocation0]]
  $region22: #{tpu_custom_call.1} parent=0
    _
  %s6 = ssub.s32 1, %s4
  %s7 = scalar_select 0, %s6, %s4
  $region1: #{tpu_custom_call.1} parent=0
    #allocation2 [shape = 'u8[4096]{0}', space=vmem, size = 0x1000, scoped, tag = 'output window, operand 0, single buffered']
    #allocation3 [shape = 's32[1]{0}', space=sflag, size = 0x4, scoped, tag = 'scoped memory for tpu_custom_call.1']
    %8 = vsyncpa [#allocation3], 0
    // Predicated region
    $region2: #{tpu_custom_call.1} parent=1 // pred_check
      _
    $region3: #{tpu_custom_call.1} parent=1 // pred_check_branch
      %10 = sbr.rel (0) target = $region5
    $region4: #{tpu_custom_call.1} parent=1 // pred_region
      _
    $region5: #{tpu_custom_call.1} parent=1 // pred_fallthru
      _
    // Predicated region
    $region6: #{tpu_custom_call.1} parent=1 // pred_check
      _
    $region7: #{tpu_custom_call.1} parent=1 // pred_check_branch
      %12 = sbr.rel (0) target = $region9
    $region8: #{tpu_custom_call.1} parent=1 // pred_region
      _
    $region9: #{tpu_custom_call.1} parent=1 // pred_fallthru
      _
    // Predicated region
    $region10: #{tpu_custom_call.1} parent=1 // pred_check
      _
    $region11: #{tpu_custom_call.1} parent=1 // pred_check_branch
      %14 = sbr.rel (0) target = $region13
    $region12: #{tpu_custom_call.1} parent=1 // pred_region
      _
    $region13: #{tpu_custom_call.1} parent=1 // pred_fallthru
      _
    %v15 = vld [vmem:[%s0] sm:$0xff]
    %v16 = vld [vmem:[%s1] sm:$0x3]
    %v17 = vld [vmem:[%s2] sm:$0x1]
    %19 = vset.pattern.permute.xlu0 0
    %20 = vperm.xlu0 %19, %v15
    %v21 = vpop.permute.xlu0 %20
    %v23 = vlaneseq
    %v24 = vshrl.u32 %v23, 7
    %v25 = vsub.s32 0, %v24
    %v26 = vrot.slane %v16, %v25
    %v27 = vmul.f32 %v21, %v26
    %v29 = vlaneseq
    %v30 = vshrl.u32 %v29, 7
    %v31 = vsub.s32 0, %v30
    %v32 = vrot.slane %v17, %v31
    %v34 = vadd.f32 %v32, %v27
    %35 = vset.pattern.permute.xlu0 1
    %36 = vperm.xlu0 %35, %v15
    %v37 = vpop.permute.xlu0 %36
    %v39 = vlaneseq
    %v40 = vshrl.u32 %v39, 7
    %v41 = vsub.s32 1, %v40
    %v42 = vrot.slane %v16, %v41
    %v43 = vmul.f32 %v37, %v42
    %v44 = vadd.f32 %v34, %v43
    %vm45 = vcmask 89088
    %46 = vst.msk [vmem:[#allocation2] sm:$0xff] %vm45, %v44
    // Predicated region
    $region14: #{tpu_custom_call.1} parent=1 // pred_check
      _
    $region15: #{tpu_custom_call.1} parent=1 // pred_check_branch
      %48 = sbr.rel (0) target = $region17
    $region16: #{tpu_custom_call.1} parent=1 // pred_region
      %s50 = ssub.s32 128, 128
      %51 = vsyncadd [#allocation3], %s50
      %s53 = sshll.u32 [#allocation2], 4
      %s54 = int_to_ptr.vmem [resolvable:$true] %s53
      %56 = dma.vmem_to_hbm [thread:$0]  %s54, 128, %s3, [#allocation3]
    $region17: #{tpu_custom_call.1} parent=1 // pred_fallthru
      _
    // Predicated region
    $region18: #{tpu_custom_call.1} parent=1 // pred_check
      _
    $region19: #{tpu_custom_call.1} parent=1 // pred_check_branch
      %58 = sbr.rel (0) target = $region21
    $region20: #{tpu_custom_call.1} parent=1 // pred_region
      %59 = dma.done [#allocation3], 128
    $region21: #{tpu_custom_call.1} parent=1 // pred_fallthru
      _
    %60 = vsyncpa [#allocation3], 1

</llo_original>
